<compile_context>
chip_gen: v5e
topology: v5e:2x2
jax: 0.10.0
libtpu: 0.0.40
codegen_flags: <defaults>
</compile_context>

<pallas_src>
import functools

import jax
import jax.numpy as jnp
from jax import lax
from jax.experimental import pallas as pl
from jax.experimental.pallas import tpu as pltpu

P_DROP = 0.5


def _round_up(n, m):
    return ((n + m - 1) // m) * m


def _keep_mask(shape, seed_u32, salt, row_offset_u32):
    """Stateless per-element keep mask with P(keep) = 0.5.

    Hash of (absolute row, col, seed, layer salt) -> uint32; keep iff top bit is 0.
    Pure VPU integer ops (no pltpu.prng_*), so it lowers on TPU and in interpret mode,
    and different grid tiles / dropout layers get independent masks for free.
    """
    rows = lax.broadcasted_iota(jnp.int32, shape, 0).astype(jnp.uint32) + row_offset_u32
    cols = lax.broadcasted_iota(jnp.int32, shape, 1).astype(jnp.uint32)
    x = (rows * jnp.uint32(0x9E3779B1)) ^ (cols * jnp.uint32(0x85EBCA77))
    x = x ^ (seed_u32 * jnp.uint32(0xC2B2AE3D) + jnp.uint32(salt))
    # fmix32-style avalanche
    x = x ^ (x >> 16)
    x = x * jnp.uint32(0x7FEB352D)
    x = x ^ (x >> 15)
    x = x * jnp.uint32(0x846CA68B)
    x = x ^ (x >> 16)
    return x < jnp.uint32(0x80000000)  # top bit == 0  ->  keep (prob 0.5)


def dropoutfc_kernel(seed_ref, x_ref,
                     w1, b1, w2, b2, w3, b3, w4, b4, w5, b5,
                     out_ref, *, tile_b):
    seed = seed_ref[0].astype(jnp.uint32)
    row_off = (pl.program_id(0) * tile_b).astype(jnp.uint32)

    x = x_ref[...]

    # Linear -> ReLU
    h = jnp.maximum(
        jnp.dot(x.astype(w1.dtype), w1[...],
                preferred_element_type=jnp.float32) + b1[...], 0.0)
    # Linear -> ReLU
    h = jnp.maximum(
        jnp.dot(h.astype(w2.dtype), w2[...],
                preferred_element_type=jnp.float32) + b2[...], 0.0)
    # Dropout(0.5) #1 — survivor scale (2.0) is pre-folded into w3.
    h = jnp.where(_keep_mask(h.shape, seed, 0x1, row_off), h, 0.0)
    # Linear -> ReLU
    h = jnp.maximum(
        jnp.dot(h.astype(w3.dtype), w3[...],
                preferred_element_type=jnp.float32) + b3[...], 0.0)
    # Dropout(0.5) #2 — survivor scale pre-folded into w4.
    h = jnp.where(_keep_mask(h.shape, seed, 0x2, row_off), h, 0.0)
    # Linear -> ReLU
    h = jnp.maximum(
        jnp.dot(h.astype(w4.dtype), w4[...],
                preferred_element_type=jnp.float32) + b4[...], 0.0)
    # Final Linear(D -> 1): VPU multiply + lane reduction (no 1-wide MXU matmul).
    out = jnp.sum(h * w5[...].astype(jnp.float32), axis=-1, keepdims=True) + b5[...]
    out_ref[...] = out.astype(out_ref.dtype)


def dropout_fc_forward(x, params, seed, *, tile_b=512, bf16_weights=False):
    """x: (B, D) float32, seed: (1,) int32. Returns (B, 1) float32 (training-mode dropout)."""
    B, D = x.shape

    # Pick a row-tile size: multiple of 8 (sublane), capped so small batches get one tile.
    if B <= tile_b:
        tile_b = _round_up(max(B, 1), 8)
    B_pad = _round_up(B, tile_b)
    if B_pad != B:
        x = jnp.pad(x, ((0, B_pad - B), (0, 0)))
    n_tiles = B_pad // tile_b

    # One-time param prep: fold the 1/(1-p) dropout scale into the consuming weights,
    # store w5 as a (1, D) row for the lane reduction, optionally cast weights to bf16
    # (MXU operands only; accumulation and elementwise math stay f32).
    scale = 1.0 / (1.0 - P_DROP)
    wdt = jnp.bfloat16 if bf16_weights else jnp.float32
    w1 = params["w1"].astype(wdt)
    w2 = params["w2"].astype(wdt)
    w3 = (params["w3"] * scale).astype(wdt)
    w4 = (params["w4"] * scale).astype(wdt)
    w5 = params["w5"].reshape(1, D).astype(wdt)
    flat = [w1, params["b1"], w2, params["b2"], w3, params["b3"],
            w4, params["b4"], w5, params["b5"]]

    def resident(shape):
        # Weights/biases: same block every grid step -> stay VMEM-resident.
        return pl.BlockSpec(shape, lambda i, seed_ref: (0, 0))

    grid_spec = pltpu.PrefetchScalarGridSpec(
        num_scalar_prefetch=1,              # seed lands in SMEM
        grid=(n_tiles,),
        in_specs=[
            pl.BlockSpec((tile_b, D), lambda i, seed_ref: (i, 0)),   # x tile
            resident((D, D)), resident((1, D)),                      # w1, b1
            resident((D, D)), resident((1, D)),                      # w2, b2
            resident((D, D)), resident((1, D)),                      # w3, b3
            resident((D, D)), resident((1, D)),                      # w4, b4
            resident((1, D)), resident((1, 1)),                      # w5 row, b5
        ],
        out_specs=pl.BlockSpec((tile_b, 1), lambda i, seed_ref: (i, 0)),
    )

    out = pl.pallas_call(
        functools.partial(dropoutfc_kernel, tile_b=tile_b),
        out_shape=jax.ShapeDtypeStruct((B_pad, 1), jnp.float32),
        grid_spec=grid_spec,
        compiler_params=pltpu.CompilerParams(
            dimension_semantics=("parallel",)),   # shard row tiles across TCs (v7x)
    )(seed, x, *flat)
    return out[:B]


def init_params(key, D):
    """Deterministic PyTorch-style (Kaiming-uniform-ish) Linear init."""
    keys = jax.random.split(key, 10)

    def linear(kw, kb, fan_in, fan_out):
        bound = 1.0 / (fan_in ** 0.5)
        w = jax.random.uniform(kw, (fan_in, fan_out), jnp.float32, -bound, bound)
        b = jax.random.uniform(kb, (1, fan_out), jnp.float32, -bound, bound)
        return w, b

    w1, b1 = linear(keys[0], keys[1], D, D)
    w2, b2 = linear(keys[2], keys[3], D, D)
    w3, b3 = linear(keys[4], keys[5], D, D)
    w4, b4 = linear(keys[6], keys[7], D, D)
    w5, b5 = linear(keys[8], keys[9], D, 1)
    return dict(w1=w1, b1=b1, w2=w2, b2=b2, w3=w3, b3=b3,
                w4=w4, b4=b4, w5=w5, b5=b5)


if __name__ == "__main__":
    B, D = 8, 128  # small demo shapes; D=128 keeps the lane dim MXU/VPU aligned
    key = jax.random.PRNGKey(0)
    kx, kp = jax.random.split(key)
    x = jax.random.normal(kx, (B, D), jnp.float32)
    params = init_params(kp, D)
    seed = jnp.array([0], jnp.int32)

    out = dropout_fc_forward(x, params, seed)
    out = jax.block_until_ready(out)
    assert out.shape == (B, 1) and out.dtype == jnp.float32
    assert bool(jnp.all(jnp.isfinite(out)))
    print("KERNEL_OK")
</pallas_src>

<mosaic_0001>
module attributes {stable_mosaic.version = 11 : i64} {
  func.func @dropoutfc_kernel(%arg0: i32, %arg1: memref<1xi32, #tpu.memory_space<smem>>, %arg2: memref<8x128xf32, #tpu.memory_space<vmem>>, %arg3: memref<128x128xf32, #tpu.memory_space<vmem>>, %arg4: memref<1x128xf32, #tpu.memory_space<vmem>>, %arg5: memref<128x128xf32, #tpu.memory_space<vmem>>, %arg6: memref<1x128xf32, #tpu.memory_space<vmem>>, %arg7: memref<128x128xf32, #tpu.memory_space<vmem>>, %arg8: memref<1x128xf32, #tpu.memory_space<vmem>>, %arg9: memref<128x128xf32, #tpu.memory_space<vmem>>, %arg10: memref<1x128xf32, #tpu.memory_space<vmem>>, %arg11: memref<1x128xf32, #tpu.memory_space<vmem>>, %arg12: memref<1x1xf32, #tpu.memory_space<vmem>>, %arg13: memref<8x1xf32, #tpu.memory_space<vmem>>) attributes {dimension_semantics = [#tpu.dimension_semantics<parallel>], iteration_bounds = array<i64: 1>, scalar_prefetch = 1 : i64, scratch_operands = 0 : i64, tpu.core_type = #tpu.core_type<tc>, window_params = [{transform_indices = @transform_0, window_bounds = array<i64: 8, 128>}, {pipeline_mode = #tpu.pipeline_mode<synchronous>, transform_indices = @transform_1, window_bounds = array<i64: 128, 128>}, {pipeline_mode = #tpu.pipeline_mode<synchronous>, transform_indices = @transform_2, window_bounds = array<i64: 1, 128>}, {pipeline_mode = #tpu.pipeline_mode<synchronous>, transform_indices = @transform_3, window_bounds = array<i64: 128, 128>}, {pipeline_mode = #tpu.pipeline_mode<synchronous>, transform_indices = @transform_4, window_bounds = array<i64: 1, 128>}, {pipeline_mode = #tpu.pipeline_mode<synchronous>, transform_indices = @transform_5, window_bounds = array<i64: 128, 128>}, {pipeline_mode = #tpu.pipeline_mode<synchronous>, transform_indices = @transform_6, window_bounds = array<i64: 1, 128>}, {pipeline_mode = #tpu.pipeline_mode<synchronous>, transform_indices = @transform_7, window_bounds = array<i64: 128, 128>}, {pipeline_mode = #tpu.pipeline_mode<synchronous>, transform_indices = @transform_8, window_bounds = array<i64: 1, 128>}, {pipeline_mode = #tpu.pipeline_mode<synchronous>, transform_indices = @transform_9, window_bounds = array<i64: 1, 128>}, {pipeline_mode = #tpu.pipeline_mode<synchronous>, transform_indices = @transform_10, window_bounds = array<i64: 1, 1>}, {transform_indices = @transform_11, window_bounds = array<i64: 8, 1>}]} {
    %c0 = arith.constant 0 : index
    %0 = memref.load %arg1[%c0] : memref<1xi32, #tpu.memory_space<smem>>
    %c8_i32 = arith.constant 8 : i32
    %1 = arith.muli %arg0, %c8_i32 : i32
    %c0_0 = arith.constant 0 : index
    %c0_1 = arith.constant 0 : index
    %2 = vector.load %arg2[%c0_0, %c0_1] : memref<8x128xf32, #tpu.memory_space<vmem>>, vector<8x128xf32>
    %c0_2 = arith.constant 0 : index
    %c0_3 = arith.constant 0 : index
    %3 = vector.load %arg3[%c0_2, %c0_3] : memref<128x128xf32, #tpu.memory_space<vmem>>, vector<128x128xf32>
    %cst = arith.constant dense<0.000000e+00> : vector<8x128xf32>
    %4 = tpu.matmul %2, %3, %cst {dimension_numbers = #tpu.dot_dimension_numbers<[1], [0], [0], [1], [0, 0, 1, 1], [], []>} : vector<8x128xf32>, vector<128x128xf32>, vector<8x128xf32> -> vector<8x128xf32>
    %c0_4 = arith.constant 0 : index
    %c0_5 = arith.constant 0 : index
    %5 = vector.load %arg4[%c0_4, %c0_5] : memref<1x128xf32, #tpu.memory_space<vmem>>, vector<1x128xf32>
    %6 = vector.broadcast %5 : vector<1x128xf32> to vector<8x128xf32>
    %7 = arith.addf %4, %6 : vector<8x128xf32>
    %cst_6 = arith.constant 0.000000e+00 : f32
    %8 = vector.broadcast %cst_6 : f32 to vector<8x128xf32>
    %9 = arith.maximumf %7, %8 : vector<8x128xf32>
    %c0_7 = arith.constant 0 : index
    %c0_8 = arith.constant 0 : index
    %10 = vector.load %arg5[%c0_7, %c0_8] : memref<128x128xf32, #tpu.memory_space<vmem>>, vector<128x128xf32>
    %cst_9 = arith.constant dense<0.000000e+00> : vector<8x128xf32>
    %11 = tpu.matmul %9, %10, %cst_9 {dimension_numbers = #tpu.dot_dimension_numbers<[1], [0], [0], [1], [0, 0, 1, 1], [], []>} : vector<8x128xf32>, vector<128x128xf32>, vector<8x128xf32> -> vector<8x128xf32>
    %c0_10 = arith.constant 0 : index
    %c0_11 = arith.constant 0 : index
    %12 = vector.load %arg6[%c0_10, %c0_11] : memref<1x128xf32, #tpu.memory_space<vmem>>, vector<1x128xf32>
    %13 = vector.broadcast %12 : vector<1x128xf32> to vector<8x128xf32>
    %14 = arith.addf %11, %13 : vector<8x128xf32>
    %cst_12 = arith.constant 0.000000e+00 : f32
    %15 = vector.broadcast %cst_12 : f32 to vector<8x128xf32>
    %16 = arith.maximumf %14, %15 : vector<8x128xf32>
    %17 = tpu.iota {dimensions = array<i32: 0>} : vector<8x128xi32>
    %18 = vector.broadcast %1 : i32 to vector<8x128xi32>
    %19 = arith.addi %17, %18 : vector<8x128xi32>
    %20 = tpu.iota {dimensions = array<i32: 1>} : vector<8x128xi32>
    %c-1640531535_i32 = arith.constant -1640531535 : i32
    %21 = vector.broadcast %c-1640531535_i32 : i32 to vector<8x128xi32>
    %22 = arith.muli %19, %21 : vector<8x128xi32>
    %c-2048144777_i32 = arith.constant -2048144777 : i32
    %23 = vector.broadcast %c-2048144777_i32 : i32 to vector<8x128xi32>
    %24 = arith.muli %20, %23 : vector<8x128xi32>
    %25 = arith.xori %22, %24 : vector<8x128xi32>
    %c-1028477379_i32 = arith.constant -1028477379 : i32
    %26 = arith.muli %0, %c-1028477379_i32 : i32
    %c1_i32 = arith.constant 1 : i32
    %27 = arith.addi %26, %c1_i32 : i32
    %28 = vector.broadcast %27 : i32 to vector<8x128xi32>
    %29 = arith.xori %25, %28 : vector<8x128xi32>
    %c16_i32 = arith.constant 16 : i32
    %30 = vector.broadcast %c16_i32 : i32 to vector<8x128xi32>
    %31 = arith.shrui %29, %30 : vector<8x128xi32>
    %32 = arith.xori %29, %31 : vector<8x128xi32>
    %c2146121005_i32 = arith.constant 2146121005 : i32
    %33 = vector.broadcast %c2146121005_i32 : i32 to vector<8x128xi32>
    %34 = arith.muli %32, %33 : vector<8x128xi32>
    %c15_i32 = arith.constant 15 : i32
    %35 = vector.broadcast %c15_i32 : i32 to vector<8x128xi32>
    %36 = arith.shrui %34, %35 : vector<8x128xi32>
    %37 = arith.xori %34, %36 : vector<8x128xi32>
    %c-2073254261_i32 = arith.constant -2073254261 : i32
    %38 = vector.broadcast %c-2073254261_i32 : i32 to vector<8x128xi32>
    %39 = arith.muli %37, %38 : vector<8x128xi32>
    %c16_i32_13 = arith.constant 16 : i32
    %40 = vector.broadcast %c16_i32_13 : i32 to vector<8x128xi32>
    %41 = arith.shrui %39, %40 : vector<8x128xi32>
    %42 = arith.xori %39, %41 : vector<8x128xi32>
    %c-2147483648_i32 = arith.constant -2147483648 : i32
    %43 = vector.broadcast %c-2147483648_i32 : i32 to vector<8x128xi32>
    %44 = arith.cmpi ult, %42, %43 : vector<8x128xi32>
    %cst_14 = arith.constant 0.000000e+00 : f32
    %45 = vector.broadcast %cst_14 : f32 to vector<8x128xf32>
    %46 = arith.select %44, %16, %45 : vector<8x128xi1>, vector<8x128xf32>
    %c0_15 = arith.constant 0 : index
    %c0_16 = arith.constant 0 : index
    %47 = vector.load %arg7[%c0_15, %c0_16] : memref<128x128xf32, #tpu.memory_space<vmem>>, vector<128x128xf32>
    %cst_17 = arith.constant dense<0.000000e+00> : vector<8x128xf32>
    %48 = tpu.matmul %46, %47, %cst_17 {dimension_numbers = #tpu.dot_dimension_numbers<[1], [0], [0], [1], [0, 0, 1, 1], [], []>} : vector<8x128xf32>, vector<128x128xf32>, vector<8x128xf32> -> vector<8x128xf32>
    %c0_18 = arith.constant 0 : index
    %c0_19 = arith.constant 0 : index
    %49 = vector.load %arg8[%c0_18, %c0_19] : memref<1x128xf32, #tpu.memory_space<vmem>>, vector<1x128xf32>
    %50 = vector.broadcast %49 : vector<1x128xf32> to vector<8x128xf32>
    %51 = arith.addf %48, %50 : vector<8x128xf32>
    %cst_20 = arith.constant 0.000000e+00 : f32
    %52 = vector.broadcast %cst_20 : f32 to vector<8x128xf32>
    %53 = arith.maximumf %51, %52 : vector<8x128xf32>
    %54 = tpu.iota {dimensions = array<i32: 0>} : vector<8x128xi32>
    %55 = vector.broadcast %1 : i32 to vector<8x128xi32>
    %56 = arith.addi %54, %55 : vector<8x128xi32>
    %57 = tpu.iota {dimensions = array<i32: 1>} : vector<8x128xi32>
    %c-1640531535_i32_21 = arith.constant -1640531535 : i32
    %58 = vector.broadcast %c-1640531535_i32_21 : i32 to vector<8x128xi32>
    %59 = arith.muli %56, %58 : vector<8x128xi32>
    %c-2048144777_i32_22 = arith.constant -2048144777 : i32
    %60 = vector.broadcast %c-2048144777_i32_22 : i32 to vector<8x128xi32>
    %61 = arith.muli %57, %60 : vector<8x128xi32>
    %62 = arith.xori %59, %61 : vector<8x128xi32>
    %c-1028477379_i32_23 = arith.constant -1028477379 : i32
    %63 = arith.muli %0, %c-1028477379_i32_23 : i32
    %c2_i32 = arith.constant 2 : i32
    %64 = arith.addi %63, %c2_i32 : i32
    %65 = vector.broadcast %64 : i32 to vector<8x128xi32>
    %66 = arith.xori %62, %65 : vector<8x128xi32>
    %c16_i32_24 = arith.constant 16 : i32
    %67 = vector.broadcast %c16_i32_24 : i32 to vector<8x128xi32>
    %68 = arith.shrui %66, %67 : vector<8x128xi32>
    %69 = arith.xori %66, %68 : vector<8x128xi32>
    %c2146121005_i32_25 = arith.constant 2146121005 : i32
    %70 = vector.broadcast %c2146121005_i32_25 : i32 to vector<8x128xi32>
    %71 = arith.muli %69, %70 : vector<8x128xi32>
    %c15_i32_26 = arith.constant 15 : i32
    %72 = vector.broadcast %c15_i32_26 : i32 to vector<8x128xi32>
    %73 = arith.shrui %71, %72 : vector<8x128xi32>
    %74 = arith.xori %71, %73 : vector<8x128xi32>
    %c-2073254261_i32_27 = arith.constant -2073254261 : i32
    %75 = vector.broadcast %c-2073254261_i32_27 : i32 to vector<8x128xi32>
    %76 = arith.muli %74, %75 : vector<8x128xi32>
    %c16_i32_28 = arith.constant 16 : i32
    %77 = vector.broadcast %c16_i32_28 : i32 to vector<8x128xi32>
    %78 = arith.shrui %76, %77 : vector<8x128xi32>
    %79 = arith.xori %76, %78 : vector<8x128xi32>
    %c-2147483648_i32_29 = arith.constant -2147483648 : i32
    %80 = vector.broadcast %c-2147483648_i32_29 : i32 to vector<8x128xi32>
    %81 = arith.cmpi ult, %79, %80 : vector<8x128xi32>
    %cst_30 = arith.constant 0.000000e+00 : f32
    %82 = vector.broadcast %cst_30 : f32 to vector<8x128xf32>
    %83 = arith.select %81, %53, %82 : vector<8x128xi1>, vector<8x128xf32>
    %c0_31 = arith.constant 0 : index
    %c0_32 = arith.constant 0 : index
    %84 = vector.load %arg9[%c0_31, %c0_32] : memref<128x128xf32, #tpu.memory_space<vmem>>, vector<128x128xf32>
    %cst_33 = arith.constant dense<0.000000e+00> : vector<8x128xf32>
    %85 = tpu.matmul %83, %84, %cst_33 {dimension_numbers = #tpu.dot_dimension_numbers<[1], [0], [0], [1], [0, 0, 1, 1], [], []>} : vector<8x128xf32>, vector<128x128xf32>, vector<8x128xf32> -> vector<8x128xf32>
    %c0_34 = arith.constant 0 : index
    %c0_35 = arith.constant 0 : index
    %86 = vector.load %arg10[%c0_34, %c0_35] : memref<1x128xf32, #tpu.memory_space<vmem>>, vector<1x128xf32>
    %87 = vector.broadcast %86 : vector<1x128xf32> to vector<8x128xf32>
    %88 = arith.addf %85, %87 : vector<8x128xf32>
    %cst_36 = arith.constant 0.000000e+00 : f32
    %89 = vector.broadcast %cst_36 : f32 to vector<8x128xf32>
    %90 = arith.maximumf %88, %89 : vector<8x128xf32>
    %c0_37 = arith.constant 0 : index
    %c0_38 = arith.constant 0 : index
    %91 = vector.load %arg11[%c0_37, %c0_38] : memref<1x128xf32, #tpu.memory_space<vmem>>, vector<1x128xf32>
    %92 = vector.broadcast %91 : vector<1x128xf32> to vector<8x128xf32>
    %93 = arith.mulf %90, %92 : vector<8x128xf32>
    %cst_39 = arith.constant dense<0.000000e+00> : vector<8xf32>
    %94 = vector.multi_reduction <add>, %93, %cst_39 [1] : vector<8x128xf32> to vector<8xf32>
    %95 = vector.shape_cast %94 : vector<8xf32> to vector<8x1xf32>
    %c0_40 = arith.constant 0 : index
    %c0_41 = arith.constant 0 : index
    %96 = vector.load %arg12[%c0_40, %c0_41] : memref<1x1xf32, #tpu.memory_space<vmem>>, vector<1x1xf32>
    %97 = vector.broadcast %96 : vector<1x1xf32> to vector<8x1xf32>
    %98 = arith.addf %95, %97 : vector<8x1xf32>
    %c0_42 = arith.constant 0 : index
    %c0_43 = arith.constant 0 : index
    %99 = vector.load %arg13[%c0_42, %c0_43] : memref<8x1xf32, #tpu.memory_space<vmem>>, vector<8x1xf32>
    tpu.vector_store %arg13[%c0_42, %c0_43], %98 {strides = array<i32>} : memref<8x1xf32, #tpu.memory_space<vmem>>, vector<8x1xf32>,
    return
  }
  func.func @transform_0(%arg0: i32, %arg1: memref<1xi32, #tpu.memory_space<smem>>) -> (i32, i32) {
    %c0_i32 = arith.constant 0 : i32
    %c0_i32_0 = arith.constant 0 : i32
    return %arg0, %c0_i32 : i32, i32
  }
  func.func @transform_1(%arg0: i32, %arg1: memref<1xi32, #tpu.memory_space<smem>>) -> (i32, i32) {
    %c0_i32 = arith.constant 0 : i32
    %c0_i32_0 = arith.constant 0 : i32
    %c0_i32_1 = arith.constant 0 : i32
    return %c0_i32, %c0_i32_0 : i32, i32
  }
  func.func @transform_2(%arg0: i32, %arg1: memref<1xi32, #tpu.memory_space<smem>>) -> (i32, i32) {
    %c0_i32 = arith.constant 0 : i32
    %c0_i32_0 = arith.constant 0 : i32
    %c0_i32_1 = arith.constant 0 : i32
    return %c0_i32, %c0_i32_0 : i32, i32
  }
  func.func @transform_3(%arg0: i32, %arg1: memref<1xi32, #tpu.memory_space<smem>>) -> (i32, i32) {
    %c0_i32 = arith.constant 0 : i32
    %c0_i32_0 = arith.constant 0 : i32
    %c0_i32_1 = arith.constant 0 : i32
    return %c0_i32, %c0_i32_0 : i32, i32
  }
  func.func @transform_4(%arg0: i32, %arg1: memref<1xi32, #tpu.memory_space<smem>>) -> (i32, i32) {
    %c0_i32 = arith.constant 0 : i32
    %c0_i32_0 = arith.constant 0 : i32
    %c0_i32_1 = arith.constant 0 : i32
    return %c0_i32, %c0_i32_0 : i32, i32
  }
  func.func @transform_5(%arg0: i32, %arg1: memref<1xi32, #tpu.memory_space<smem>>) -> (i32, i32) {
    %c0_i32 = arith.constant 0 : i32
    %c0_i32_0 = arith.constant 0 : i32
    %c0_i32_1 = arith.constant 0 : i32
    return %c0_i32, %c0_i32_0 : i32, i32
  }
  func.func @transform_6(%arg0: i32, %arg1: memref<1xi32, #tpu.memory_space<smem>>) -> (i32, i32) {
    %c0_i32 = arith.constant 0 : i32
    %c0_i32_0 = arith.constant 0 : i32
    %c0_i32_1 = arith.constant 0 : i32
    return %c0_i32, %c0_i32_0 : i32, i32
  }
  func.func @transform_7(%arg0: i32, %arg1: memref<1xi32, #tpu.memory_space<smem>>) -> (i32, i32) {
    %c0_i32 = arith.constant 0 : i32
    %c0_i32_0 = arith.constant 0 : i32
    %c0_i32_1 = arith.constant 0 : i32
    return %c0_i32, %c0_i32_0 : i32, i32
  }
  func.func @transform_8(%arg0: i32, %arg1: memref<1xi32, #tpu.memory_space<smem>>) -> (i32, i32) {
    %c0_i32 = arith.constant 0 : i32
    %c0_i32_0 = arith.constant 0 : i32
    %c0_i32_1 = arith.constant 0 : i32
    return %c0_i32, %c0_i32_0 : i32, i32
  }
  func.func @transform_9(%arg0: i32, %arg1: memref<1xi32, #tpu.memory_space<smem>>) -> (i32, i32) {
    %c0_i32 = arith.constant 0 : i32
    %c0_i32_0 = arith.constant 0 : i32
    %c0_i32_1 = arith.constant 0 : i32
    return %c0_i32, %c0_i32_0 : i32, i32
  }
  func.func @transform_10(%arg0: i32, %arg1: memref<1xi32, #tpu.memory_space<smem>>) -> (i32, i32) {
    %c0_i32 = arith.constant 0 : i32
    %c0_i32_0 = arith.constant 0 : i32
    %c0_i32_1 = arith.constant 0 : i32
    return %c0_i32, %c0_i32_0 : i32, i32
  }
  func.func @transform_11(%arg0: i32, %arg1: memref<1xi32, #tpu.memory_space<smem>>) -> (i32, i32) {
    %c0_i32 = arith.constant 0 : i32
    %c0_i32_0 = arith.constant 0 : i32
    return %arg0, %c0_i32 : i32, i32
  }
}

</mosaic_0001>

<llo_original>
// kernel: tpu_custom_call.1
$region0: #{tpu_custom_call.1}
  #allocation0 [shape = 'u32[]', space=smem, size = 0x4, offset = 0x4, fixed_abs, tag = 'smem constant byte address 0x4 - core index']
  #allocation1 [shape = 'u32[72,128]{1,0:T(1,128)}', space=vmem, size = 0x9000, scoped, tag = 'internal scratch']
  #allocation2 [shape = 's32[1]{0}', space=sflag, size = 0x4, scoped, tag = 'scoped memory for tpu_custom_call.1']
  #allocation3 [shape = 's32[1]{0:T(128)S(6)}', space=smem, size = 0x200, scoped, tag = 'prefetched SMEM operand 0']
  #allocation4 [shape = 'f32[1,1]{1,0:T(1,128)S(1)}', space=vmem, size = 0x200, scoped, tag = 'scoped memory for tpu_custom_call.1']
  %s0 = inlined_call_operand.<no memory space> [shape: s32[1], index: 0, kind: input, shape index: {}]
  %s1 = inlined_call_operand.hbm [shape: f32[8,128], index: 1, kind: input, shape index: {}]
  %s2 = inlined_call_operand.hbm [shape: f32[128,128], index: 2, kind: input, shape index: {}]
  %s3 = inlined_call_operand.vmem [shape: f32[1,128], index: 3, kind: input, shape index: {}]
  %s4 = inlined_call_operand.hbm [shape: f32[128,128], index: 4, kind: input, shape index: {}]
  %s5 = inlined_call_operand.vmem [shape: f32[1,128], index: 5, kind: input, shape index: {}]
  %s6 = inlined_call_operand.hbm [shape: f32[128,128], index: 6, kind: input, shape index: {}]
  %s7 = inlined_call_operand.vmem [shape: f32[1,128], index: 7, kind: input, shape index: {}]
  %s8 = inlined_call_operand.hbm [shape: f32[128,128], index: 8, kind: input, shape index: {}]
  %s9 = inlined_call_operand.vmem [shape: f32[1,128], index: 9, kind: input, shape index: {}]
  %s10 = inlined_call_operand.vmem [shape: f32[1,128], index: 10, kind: input, shape index: {}]
  %s11 = inlined_call_operand.<no memory space> [shape: f32[1,1], index: 11, kind: input, shape index: {}]
  %s12 = inlined_call_operand.vmem [shape: f32[8,1], index: 12, kind: output, shape index: {}]
  %s13 = sld [smem:[#allocation0]]
  $region74: #{tpu_custom_call.1} parent=0
    _
  %s15 = ssub.s32 1, %s13
  %s16 = scalar_select 0, %s15, %s13
  %17 = sst [smem:[#allocation3]] %s0
  %v18 = vstv %s11
  %19 = vst [vmem:[#allocation4] sm:$0x1] %v18
  $region1: #{tpu_custom_call.1} parent=0
    #allocation5 [shape = 'u8[4096]{0}', space=vmem, size = 0x1000, scoped, tag = 'input window, operand 1, single buffered']
    #allocation6 [shape = 's32[1]{0}', space=sflag, size = 0x4, scoped, tag = 'scoped memory for tpu_custom_call.1']
    #allocation7 [shape = 'u8[65536]{0}', space=vmem, size = 0x10000, scoped, tag = 'input window, operand 2, single buffered']
    #allocation8 [shape = 's32[1]{0}', space=sflag, size = 0x4, scoped, tag = 'scoped memory for tpu_custom_call.1']
    #allocation9 [shape = 'u8[65536]{0}', space=vmem, size = 0x10000, scoped, tag = 'input window, operand 4, single buffered']
    #allocation10 [shape = 'u8[65536]{0}', space=vmem, size = 0x10000, scoped, tag = 'input window, operand 6, single buffered']
    #allocation11 [shape = 's32[1]{0}', space=sflag, size = 0x4, scoped, tag = 'scoped memory for tpu_custom_call.1']
    #allocation12 [shape = 'u8[65536]{0}', space=vmem, size = 0x10000, scoped, tag = 'input window, operand 8, single buffered']
    %20 = vsyncpa [#allocation6], 0
    %21 = vsyncpa [#allocation8], 0
    %22 = vsyncpa [#allocation11], 0
    // Predicated region
    $region2: #{tpu_custom_call.1} parent=1 // pred_check
      _
    $region3: #{tpu_custom_call.1} parent=1 // pred_check_branch
      %24 = sbr.rel (0) target = $region5
    $region4: #{tpu_custom_call.1} parent=1 // pred_region
      %26 = vsyncadd [#allocation6], 0
      %s28 = sshll.u32 %s1, 4
      %s29 = int_to_ptr.hbm [resolvable:$true] %s28
      %s30 = sshll.u32 [#allocation5], 4
      %s31 = int_to_ptr.vmem [resolvable:$true] %s30
      %33 = dma.hbm_to_vmem [thread:$0]  %s29, 128, %s31, [#allocation6]
    $region5: #{tpu_custom_call.1} parent=1 // pred_fallthru
      _
    // Predicated region
    $region6: #{tpu_custom_call.1} parent=1 // pred_check
      _
    $region7: #{tpu_custom_call.1} parent=1 // pred_check_branch
      %35 = sbr.rel (0) target = $region9
    $region8: #{tpu_custom_call.1} parent=1 // pred_region
      %37 = vsyncadd [#allocation8], 0
      %s38 = sshll.u32 %s2, 4
      %s39 = int_to_ptr.hbm [resolvable:$true] %s38
      %s40 = sshll.u32 [#allocation7], 4
      %s41 = int_to_ptr.vmem [resolvable:$true] %s40
      %46 = dma.hbm_to_vmem [thread:$0]  %s39, 2048, %s41, [#allocation8], 128, 128, 8
    $region9: #{tpu_custom_call.1} parent=1 // pred_fallthru
      _
    // Predicated region
    $region10: #{tpu_custom_call.1} parent=1 // pred_check
      _
    $region11: #{tpu_custom_call.1} parent=1 // pred_check_branch
      %48 = sbr.rel (0) target = $region13
    $region12: #{tpu_custom_call.1} parent=1 // pred_region
      _
    $region13: #{tpu_custom_call.1} parent=1 // pred_fallthru
      _
    // Predicated region
    $region14: #{tpu_custom_call.1} parent=1 // pred_check
      _
    $region15: #{tpu_custom_call.1} parent=1 // pred_check_branch
      %50 = sbr.rel (0) target = $region17
    $region16: #{tpu_custom_call.1} parent=1 // pred_region
      %52 = vsyncadd [#allocation8], 0
      %s53 = sshll.u32 %s4, 4
      %s54 = int_to_ptr.hbm [resolvable:$true] %s53
      %s55 = sshll.u32 [#allocation9], 4
      %s56 = int_to_ptr.vmem [resolvable:$true] %s55
      %61 = dma.hbm_to_vmem [thread:$0]  %s54, 2048, %s56, [#allocation8], 128, 128, 8
    $region17: #{tpu_custom_call.1} parent=1 // pred_fallthru
      _
    // Predicated region
    $region18: #{tpu_custom_call.1} parent=1 // pred_check
      _
    $region19: #{tpu_custom_call.1} parent=1 // pred_check_branch
      %63 = sbr.rel (0) target = $region21
    $region20: #{tpu_custom_call.1} parent=1 // pred_region
      _
    $region21: #{tpu_custom_call.1} parent=1 // pred_fallthru
      _
    // Predicated region
    $region22: #{tpu_custom_call.1} parent=1 // pred_check
      _
    $region23: #{tpu_custom_call.1} parent=1 // pred_check_branch
      %65 = sbr.rel (0) target = $region25
    $region24: #{tpu_custom_call.1} parent=1 // pred_region
      %67 = vsyncadd [#allocation11], 0
      %s68 = sshll.u32 %s6, 4
      %s69 = int_to_ptr.hbm [resolvable:$true] %s68
      %s70 = sshll.u32 [#allocation10], 4
      %s71 = int_to_ptr.vmem [resolvable:$true] %s70
      %76 = dma.hbm_to_vmem [thread:$0]  %s69, 2048, %s71, [#allocation11], 128, 128, 8
    $region25: #{tpu_custom_call.1} parent=1 // pred_fallthru
      _
    // Predicated region
    $region26: #{tpu_custom_call.1} parent=1 // pred_check
      _
    $region27: #{tpu_custom_call.1} parent=1 // pred_check_branch
      %78 = sbr.rel (0) target = $region29
    $region28: #{tpu_custom_call.1} parent=1 // pred_region
      _
    $region29: #{tpu_custom_call.1} parent=1 // pred_fallthru
      _
    // Predicated region
    $region30: #{tpu_custom_call.1} parent=1 // pred_check
      _
    $region31: #{tpu_custom_call.1} parent=1 // pred_check_branch
      %80 = sbr.rel (0) target = $region33
    $region32: #{tpu_custom_call.1} parent=1 // pred_region
      %82 = vsyncadd [#allocation11], 0
      %s83 = sshll.u32 %s8, 4
      %s84 = int_to_ptr.hbm [resolvable:$true] %s83
      %s85 = sshll.u32 [#allocation12], 4
      %s86 = int_to_ptr.vmem [resolvable:$true] %s85
      %91 = dma.hbm_to_vmem [thread:$0]  %s84, 2048, %s86, [#allocation11], 128, 128, 8
    $region33: #{tpu_custom_call.1} parent=1 // pred_fallthru
      _
    // Predicated region
    $region34: #{tpu_custom_call.1} parent=1 // pred_check
      _
    $region35: #{tpu_custom_call.1} parent=1 // pred_check_branch
      %93 = sbr.rel (0) target = $region37
    $region36: #{tpu_custom_call.1} parent=1 // pred_region
      _
    $region37: #{tpu_custom_call.1} parent=1 // pred_fallthru
      _
    // Predicated region
    $region38: #{tpu_custom_call.1} parent=1 // pred_check
      _
    $region39: #{tpu_custom_call.1} parent=1 // pred_check_branch
      %95 = sbr.rel (0) target = $region41
    $region40: #{tpu_custom_call.1} parent=1 // pred_region
      _
    $region41: #{tpu_custom_call.1} parent=1 // pred_fallthru
      _
    // Predicated region
    $region42: #{tpu_custom_call.1} parent=1 // pred_check
      _
    $region43: #{tpu_custom_call.1} parent=1 // pred_check_branch
      %97 = sbr.rel (0) target = $region45
    $region44: #{tpu_custom_call.1} parent=1 // pred_region
      _
    $region45: #{tpu_custom_call.1} parent=1 // pred_fallthru
      _
    // Predicated region
    $region46: #{tpu_custom_call.1} parent=1 // pred_check
      _
    $region47: #{tpu_custom_call.1} parent=1 // pred_check_branch
      %99 = sbr.rel (0) target = $region49
    $region48: #{tpu_custom_call.1} parent=1 // pred_region
      %101 = dma.done [#allocation6], 128
    $region49: #{tpu_custom_call.1} parent=1 // pred_fallthru
      _
    // Predicated region
    $region50: #{tpu_custom_call.1} parent=1 // pred_check
      _
    $region51: #{tpu_custom_call.1} parent=1 // pred_check_branch
      %103 = sbr.rel (0) target = $region53
    $region52: #{tpu_custom_call.1} parent=1 // pred_region
      %105 = dma.done [#allocation8], 2048
    $region53: #{tpu_custom_call.1} parent=1 // pred_fallthru
      _
    // Predicated region
    $region54: #{tpu_custom_call.1} parent=1 // pred_check
      _
    $region55: #{tpu_custom_call.1} parent=1 // pred_check_branch
      %107 = sbr.rel (0) target = $region57
    $region56: #{tpu_custom_call.1} parent=1 // pred_region
      %109 = dma.done [#allocation8], 2048
    $region57: #{tpu_custom_call.1} parent=1 // pred_fallthru
      _
    // Predicated region
    $region58: #{tpu_custom_call.1} parent=1 // pred_check
      _
    $region59: #{tpu_custom_call.1} parent=1 // pred_check_branch
      %111 = sbr.rel (0) target = $region61
    $region60: #{tpu_custom_call.1} parent=1 // pred_region
      %113 = dma.done [#allocation11], 2048
    $region61: #{tpu_custom_call.1} parent=1 // pred_fallthru
      _
    // Predicated region
    $region62: #{tpu_custom_call.1} parent=1 // pred_check
      _
    $region63: #{tpu_custom_call.1} parent=1 // pred_check_branch
      %115 = sbr.rel (0) target = $region65
    $region64: #{tpu_custom_call.1} parent=1 // pred_region
      %117 = dma.done [#allocation11], 2048
    $region65: #{tpu_custom_call.1} parent=1 // pred_fallthru
      _
    %s118 = sld [smem:[#allocation3]]
    %s119 = smul.u32 0, 8
    %v120 = vld [vmem:[#allocation5] sm:$0xff]
    %v121 = vld [vmem:[#allocation7] sm:$0xff]
    %v122 = vld [vmem:[#allocation7 + $0x8] sm:$0xff]
    %v123 = vld [vmem:[#allocation7 + $0x10] sm:$0xff]
    %v124 = vld [vmem:[#allocation7 + $0x18] sm:$0xff]
    %v125 = vld [vmem:[#allocation7 + $0x20] sm:$0xff]
    %v126 = vld [vmem:[#allocation7 + $0x28] sm:$0xff]
    %v127 = vld [vmem:[#allocation7 + $0x30] sm:$0xff]
    %v128 = vld [vmem:[#allocation7 + $0x38] sm:$0xff]
    %v129 = vld [vmem:[#allocation7 + $0x40] sm:$0xff]
    %v130 = vld [vmem:[#allocation7 + $0x48] sm:$0xff]
    %v131 = vld [vmem:[#allocation7 + $0x50] sm:$0xff]
    %v132 = vld [vmem:[#allocation7 + $0x58] sm:$0xff]
    %v133 = vld [vmem:[#allocation7 + $0x60] sm:$0xff]
    %v134 = vld [vmem:[#allocation7 + $0x68] sm:$0xff]
    %v135 = vld [vmem:[#allocation7 + $0x70] sm:$0xff]
    %v136 = vld [vmem:[#allocation7 + $0x78] sm:$0xff]
    %v137 = vld [vmem:[%s3] sm:$0x1]
    %v139 = vperm.slane %v137, 0
    %141 = vmatpush.msra.mxu0 %v136
    %142 = vmatpush.msra.mxu0 %v135
    %143 = vmatpush.msra.mxu0 %v134
    %144 = vmatpush.msra.mxu0 %v133
    %145 = vmatpush.msra.mxu0 %v132
    %146 = vmatpush.msra.mxu0 %v131
    %147 = vmatpush.msra.mxu0 %v130
    %148 = vmatpush.msra.mxu0 %v129
    %149 = vmatpush.msra.mxu0 %v128
    %150 = vmatpush.msra.mxu0 %v127
    %151 = vmatpush.msra.mxu0 %v126
    %152 = vmatpush.msra.mxu0 %v125
    %153 = vmatpush.msra.mxu0 %v124
    %154 = vmatpush.msra.mxu0 %v123
    %155 = vmatpush.msra.mxu0 %v122
    %156 = vmatpush.msra.mxu0 %v121
    %157 = vmatmul.f32.gmra.mxu0 %v120
    %v158 = vpop.f32.mrf.mxu0
    %v159 = vadd.f32 %v139, %v158
    %160 = vdwg.mxu0
    %v161 = vmax.f32 %v159, 0.0
    %v162 = vld [vmem:[#allocation9] sm:$0xff]
    %v163 = vld [vmem:[#allocation9 + $0x8] sm:$0xff]
    %v164 = vld [vmem:[#allocation9 + $0x10] sm:$0xff]
    %v165 = vld [vmem:[#allocation9 + $0x18] sm:$0xff]
    %v166 = vld [vmem:[#allocation9 + $0x20] sm:$0xff]
    %v167 = vld [vmem:[#allocation9 + $0x28] sm:$0xff]
    %v168 = vld [vmem:[#allocation9 + $0x30] sm:$0xff]
    %v169 = vld [vmem:[#allocation9 + $0x38] sm:$0xff]
    %v170 = vld [vmem:[#allocation9 + $0x40] sm:$0xff]
    %v171 = vld [vmem:[#allocation9 + $0x48] sm:$0xff]
    %v172 = vld [vmem:[#allocation9 + $0x50] sm:$0xff]
    %v173 = vld [vmem:[#allocation9 + $0x58] sm:$0xff]
    %v174 = vld [vmem:[#allocation9 + $0x60] sm:$0xff]
    %v175 = vld [vmem:[#allocation9 + $0x68] sm:$0xff]
    %v176 = vld [vmem:[#allocation9 + $0x70] sm:$0xff]
    %v177 = vld [vmem:[#allocation9 + $0x78] sm:$0xff]
    %v178 = vld [vmem:[%s5] sm:$0x1]
    %v180 = vperm.slane %v178, 0
    %182 = vmatpush.msra.mxu0 %v177
    %183 = vmatpush.msra.mxu0 %v176
    %184 = vmatpush.msra.mxu0 %v175
    %185 = vmatpush.msra.mxu0 %v174
    %186 = vmatpush.msra.mxu0 %v173
    %187 = vmatpush.msra.mxu0 %v172
    %188 = vmatpush.msra.mxu0 %v171
    %189 = vmatpush.msra.mxu0 %v170
    %190 = vmatpush.msra.mxu0 %v169
    %191 = vmatpush.msra.mxu0 %v168
    %192 = vmatpush.msra.mxu0 %v167
    %193 = vmatpush.msra.mxu0 %v166
    %194 = vmatpush.msra.mxu0 %v165
    %195 = vmatpush.msra.mxu0 %v164
    %196 = vmatpush.msra.mxu0 %v163
    %197 = vmatpush.msra.mxu0 %v162
    %198 = vmatmul.f32.gmra.mxu0 %v161
    %v199 = vpop.f32.mrf.mxu0
    %v200 = vadd.f32 %v180, %v199
    %201 = vdwg.mxu0
    %v202 = vmax.f32 %v200, 0.0
    %v203 = vlaneseq
    %v204 = vshrl.u32 %v203, 7
    %v205 = vstv %s119
    %v206 = vadd.s32 %v204, %v205
    %v207 = vlaneseq
    %v208 = vand.u32 %v207, 127
    %v209 = vmul.u32 %v206, 2654435761
    %v210 = vmul.u32 %v208, 2246822519
    %v211 = vxor.u32 %v209, %v210
    %s212 = smul.u32 %s118, 3266489917
    %s213 = sadd.s32 %s212, 1
    %v214 = vstv %s213
    %v215 = vxor.u32 %v211, %v214
    %v216 = vshrl.u32 %v215, 16
    %v217 = vxor.u32 %v215, %v216
    %v218 = vmul.u32 %v217, 2146121005
    %v219 = vshrl.u32 %v218, 15
    %v220 = vxor.u32 %v218, %v219
    %v221 = vmul.u32 %v220, 2221713035
    %v222 = vshrl.u32 %v221, 16
    %v223 = vxor.u32 %v221, %v222
    %v224 = vadd.s32 %v223, 2147483648
    %vm226 = vcmp.lt.s32.totalorder %v224, 0
    %v227 = vsel %vm226, %v202, 0.0
    %v228 = vld [vmem:[#allocation10] sm:$0xff]
    %v229 = vld [vmem:[#allocation10 + $0x8] sm:$0xff]
    %v230 = vld [vmem:[#allocation10 + $0x10] sm:$0xff]
    %v231 = vld [vmem:[#allocation10 + $0x18] sm:$0xff]
    %v232 = vld [vmem:[#allocation10 + $0x20] sm:$0xff]
    %v233 = vld [vmem:[#allocation10 + $0x28] sm:$0xff]
    %v234 = vld [vmem:[#allocation10 + $0x30] sm:$0xff]
    %v235 = vld [vmem:[#allocation10 + $0x38] sm:$0xff]
    %v236 = vld [vmem:[#allocation10 + $0x40] sm:$0xff]
    %v237 = vld [vmem:[#allocation10 + $0x48] sm:$0xff]
    %v238 = vld [vmem:[#allocation10 + $0x50] sm:$0xff]
    %v239 = vld [vmem:[#allocation10 + $0x58] sm:$0xff]
    %v240 = vld [vmem:[#allocation10 + $0x60] sm:$0xff]
    %v241 = vld [vmem:[#allocation10 + $0x68] sm:$0xff]
    %v242 = vld [vmem:[#allocation10 + $0x70] sm:$0xff]
    %v243 = vld [vmem:[#allocation10 + $0x78] sm:$0xff]
    %v244 = vld [vmem:[%s7] sm:$0x1]
    %v246 = vperm.slane %v244, 0
    %248 = vmatpush.msra.mxu0 %v243
    %249 = vmatpush.msra.mxu0 %v242
    %250 = vmatpush.msra.mxu0 %v241
    %251 = vmatpush.msra.mxu0 %v240
    %252 = vmatpush.msra.mxu0 %v239
    %253 = vmatpush.msra.mxu0 %v238
    %254 = vmatpush.msra.mxu0 %v237
    %255 = vmatpush.msra.mxu0 %v236
    %256 = vmatpush.msra.mxu0 %v235
    %257 = vmatpush.msra.mxu0 %v234
    %258 = vmatpush.msra.mxu0 %v233
    %259 = vmatpush.msra.mxu0 %v232
    %260 = vmatpush.msra.mxu0 %v231
    %261 = vmatpush.msra.mxu0 %v230
    %262 = vmatpush.msra.mxu0 %v229
    %263 = vmatpush.msra.mxu0 %v228
    %264 = vmatmul.f32.gmra.mxu0 %v227
    %v265 = vpop.f32.mrf.mxu0
    %v266 = vadd.f32 %v246, %v265
    %267 = vdwg.mxu0
    %v268 = vmax.f32 %v266, 0.0
    %s269 = sadd.s32 %s212, 2
    %v270 = vstv %s269
    %v271 = vxor.u32 %v211, %v270
    %v272 = vshrl.u32 %v271, 16
    %v273 = vxor.u32 %v271, %v272
    %v274 = vmul.u32 %v273, 2146121005
    %v275 = vshrl.u32 %v274, 15
    %v276 = vxor.u32 %v274, %v275
    %v277 = vmul.u32 %v276, 2221713035
    %v278 = vshrl.u32 %v277, 16
    %v279 = vxor.u32 %v277, %v278
    %v280 = vadd.s32 %v279, 2147483648
    %vm282 = vcmp.lt.s32.totalorder %v280, 0
    %v283 = vsel %vm282, %v268, 0.0
    %v284 = vld [vmem:[#allocation12] sm:$0xff]
    %v285 = vld [vmem:[#allocation12 + $0x8] sm:$0xff]
    %v286 = vld [vmem:[#allocation12 + $0x10] sm:$0xff]
    %v287 = vld [vmem:[#allocation12 + $0x18] sm:$0xff]
    %v288 = vld [vmem:[#allocation12 + $0x20] sm:$0xff]
    %v289 = vld [vmem:[#allocation12 + $0x28] sm:$0xff]
    %v290 = vld [vmem:[#allocation12 + $0x30] sm:$0xff]
    %v291 = vld [vmem:[#allocation12 + $0x38] sm:$0xff]
    %v292 = vld [vmem:[#allocation12 + $0x40] sm:$0xff]
    %v293 = vld [vmem:[#allocation12 + $0x48] sm:$0xff]
    %v294 = vld [vmem:[#allocation12 + $0x50] sm:$0xff]
    %v295 = vld [vmem:[#allocation12 + $0x58] sm:$0xff]
    %v296 = vld [vmem:[#allocation12 + $0x60] sm:$0xff]
    %v297 = vld [vmem:[#allocation12 + $0x68] sm:$0xff]
    %v298 = vld [vmem:[#allocation12 + $0x70] sm:$0xff]
    %v299 = vld [vmem:[#allocation12 + $0x78] sm:$0xff]
    %v300 = vld [vmem:[%s9] sm:$0x1]
    %v302 = vperm.slane %v300, 0
    %304 = vmatpush.msra.mxu0 %v299
    %305 = vmatpush.msra.mxu0 %v298
    %306 = vmatpush.msra.mxu0 %v297
    %307 = vmatpush.msra.mxu0 %v296
    %308 = vmatpush.msra.mxu0 %v295
    %309 = vmatpush.msra.mxu0 %v294
    %310 = vmatpush.msra.mxu0 %v293
    %311 = vmatpush.msra.mxu0 %v292
    %312 = vmatpush.msra.mxu0 %v291
    %313 = vmatpush.msra.mxu0 %v290
    %314 = vmatpush.msra.mxu0 %v289
    %315 = vmatpush.msra.mxu0 %v288
    %316 = vmatpush.msra.mxu0 %v287
    %317 = vmatpush.msra.mxu0 %v286
    %318 = vmatpush.msra.mxu0 %v285
    %319 = vmatpush.msra.mxu0 %v284
    %320 = vmatmul.f32.gmra.mxu0 %v283
    %v321 = vpop.f32.mrf.mxu0
    %v322 = vadd.f32 %v302, %v321
    %323 = vdwg.mxu0
    %v324 = vmax.f32 %v322, 0.0
    %v325 = vld [vmem:[%s10] sm:$0x1]
    %v327 = vperm.slane %v325, 0
    %v329 = vmul.f32 %v324, %v327
    %330 = vadd.xlane.f32.xlu0 %v329
    %v331 = vpop.xlane.xlu0 %330
    %v332 = vld [vmem:[#allocation4] sm:$0x1]
    %v334 = vperm.slane %v332, 0
    %v336 = vadd.f32 %v331, %v334
    %vm337 = vcmask 7168
    %338 = vst.msk [vmem:[%s12] sm:$0xff] %vm337, %v336
    // Predicated region
    $region66: #{tpu_custom_call.1} parent=1 // pred_check
      _
    $region67: #{tpu_custom_call.1} parent=1 // pred_check_branch
      %340 = sbr.rel (0) target = $region69
    $region68: #{tpu_custom_call.1} parent=1 // pred_region
      _
    $region69: #{tpu_custom_call.1} parent=1 // pred_fallthru
      _
    // Predicated region
    $region70: #{tpu_custom_call.1} parent=1 // pred_check
      _
    $region71: #{tpu_custom_call.1} parent=1 // pred_check_branch
      %342 = sbr.rel (0) target = $region73
    $region72: #{tpu_custom_call.1} parent=1 // pred_region
      _
    $region73: #{tpu_custom_call.1} parent=1 // pred_fallthru
      _
    %343 = vsyncpa [#allocation6], 1
    %344 = vsyncpa [#allocation8], 1
    %345 = vsyncpa [#allocation11], 1

</llo_original>
